<compile_context>
chip_gen: v7x
topology: tpu7x:2x2x1
jax: 0.10.0
libtpu: 0.0.40
codegen_flags: <defaults>
</compile_context>

<pallas_src>
import math

import jax
import jax.numpy as jnp
from jax import lax
from jax.experimental import pallas as pl
from jax.experimental.pallas import tpu as pltpu

EMBEDDING_SIZE = 32
_LANE = 128
_PAD_BIAS = -1e30  # padded vocab columns never win the max / contribute to logsumexp

_VMEM = pl.BlockSpec(memory_space=pltpu.MemorySpace.VMEM)
_SMEM = pl.BlockSpec(memory_space=pltpu.MemorySpace.SMEM)


def _round_up(x, m):
    return (x + m - 1) // m * m


# ---------------------------------------------------------------------------
# Kernels
# ---------------------------------------------------------------------------
def _logits_kernel(idx_ref, m_ref, logits_ref):
    """Inference path: row gather  logits[i, :] = M[idx[i], :].

    idx_ref : SMEM (N,) int32      m_ref : VMEM (Vp, Vp) f32
    """
    n = logits_ref.shape[0]
    # N is small & static -> trace-time unrolled loop (same IR as an unrolled
    # lax.fori_loop); each iteration is a scalar-addressed (1, Vp) vld + vst.
    for i in range(n):
        logits_ref[pl.ds(i, 1), :] = m_ref[pl.ds(idx_ref[i], 1), :]


def _gather_and_ce(idx_ref, tgt_ref, m_ref, logits_dst, tgt_scratch, loss_ref):
    """Shared body: gather rows into `logits_dst`, fused mean cross-entropy."""
    n, vp = logits_dst.shape
    lane = lax.broadcasted_iota(jnp.int32, (1, vp), 1)
    for i in range(n):
        row = m_ref[pl.ds(idx_ref[i], 1), :]                  # (1, Vp) gather
        logits_dst[pl.ds(i, 1), :] = row
        # target logit via masked select (NOT 0 * -1e30, which could NaN if
        # the sentinel ever becomes -inf).
        tgt_scratch[pl.ds(i, 1), :] = jnp.sum(
            jnp.where(lane == tgt_ref[i], row, 0.0), axis=-1, keepdims=True)

    # Vectorized logsumexp over the full (N, Vp) block.  Padded columns carry
    # -1e30 -> never the max, exp underflows to 0.
    logits = logits_dst[...]
    mx = jnp.max(logits, axis=-1, keepdims=True)
    lse = mx + jnp.log(jnp.sum(jnp.exp(logits - mx), axis=-1, keepdims=True))
    loss_ref[0] = jnp.mean(lse - tgt_scratch[...])


def _logits_loss_kernel(idx_ref, tgt_ref, m_ref, logits_ref, loss_ref, tgt_scratch):
    """Training path: padded logits output + fused mean CE (loss -> SMEM (1,))."""
    _gather_and_ce(idx_ref, tgt_ref, m_ref, logits_ref, tgt_scratch, loss_ref)


def _loss_only_kernel(idx_ref, tgt_ref, m_ref, loss_ref, logits_scratch, tgt_scratch):
    """Loss-only path: gathered logits stay in VMEM scratch, no HBM writeback."""
    _gather_and_ce(idx_ref, tgt_ref, m_ref, logits_scratch, tgt_scratch, loss_ref)


# ---------------------------------------------------------------------------
# pallas_call wrappers
# ---------------------------------------------------------------------------
def _run_logits(idx_flat, table):
    n = idx_flat.shape[0]
    vp = table.shape[1]
    cost = pl.CostEstimate(
        flops=n * vp,
        transcendentals=0,
        bytes_accessed=idx_flat.size * 4 + table.size * 4 + n * vp * 4)
    return pl.pallas_call(
        _logits_kernel,
        out_shape=jax.ShapeDtypeStruct((n, vp), jnp.float32),
        in_specs=[_SMEM, _VMEM],
        out_specs=_VMEM,
        cost_estimate=cost,
    )(idx_flat, table)


def _run_logits_loss(idx_flat, tgt_flat, table):
    n = idx_flat.shape[0]
    vp = table.shape[1]
    cost = pl.CostEstimate(
        flops=6 * n * vp,
        transcendentals=n * vp + n,
        bytes_accessed=2 * idx_flat.size * 4 + table.size * 4 + n * vp * 4 + 4)
    return pl.pallas_call(
        _logits_loss_kernel,
        out_shape=(jax.ShapeDtypeStruct((n, vp), jnp.float32),
                   jax.ShapeDtypeStruct((1,), jnp.float32)),
        in_specs=[_SMEM, _SMEM, _VMEM],
        out_specs=(_VMEM, _SMEM),
        scratch_shapes=[pltpu.VMEM((n, 1), jnp.float32)],
        cost_estimate=cost,
    )(idx_flat, tgt_flat, table)


def _run_loss_only(idx_flat, tgt_flat, table):
    n = idx_flat.shape[0]
    vp = table.shape[1]
    cost = pl.CostEstimate(
        flops=6 * n * vp,
        transcendentals=n * vp + n,
        bytes_accessed=2 * idx_flat.size * 4 + table.size * 4 + 4)
    return pl.pallas_call(
        _loss_only_kernel,
        out_shape=jax.ShapeDtypeStruct((1,), jnp.float32),
        in_specs=[_SMEM, _SMEM, _VMEM],
        out_specs=_SMEM,
        scratch_shapes=[pltpu.VMEM((n, vp), jnp.float32),
                        pltpu.VMEM((n, 1), jnp.float32)],
        cost_estimate=cost,
    )(idx_flat, tgt_flat, table)


# ---------------------------------------------------------------------------
# Parameters / forward
# ---------------------------------------------------------------------------
def init_params(key, vocab_size, embedding_size=EMBEDDING_SIZE):
    k_emb, k_w, k_b = jax.random.split(key, 3)
    bound = 1.0 / math.sqrt(embedding_size)
    return {
        # nn.Embedding default init: N(0, 1)
        "embedding": jax.random.normal(k_emb, (vocab_size, embedding_size), jnp.float32),
        # nn.Linear default init: U(-1/sqrt(in), 1/sqrt(in))
        "w": jax.random.uniform(k_w, (vocab_size, embedding_size), jnp.float32, -bound, bound),
        "b": jax.random.uniform(k_b, (vocab_size,), jnp.float32, -bound, bound),
    }


def fold_bigram_table(params):
    """Fold Embedding + Linear into one padded (V_pad, V_pad) bigram table.

    Parameter-only precompute: cache and reuse across forward / generate steps.
    Padded weight rows are zero; padded bias columns are -1e30 (finite sentinel)
    so they vanish in the kernel's max/logsumexp.
    """
    emb = params["embedding"].astype(jnp.float32)
    w = params["w"].astype(jnp.float32)
    b = params["b"].astype(jnp.float32)
    v, e = emb.shape
    vp = _round_up(v, _LANE)
    emb_p = jnp.zeros((vp, e), jnp.float32).at[:v].set(emb)
    w_p = jnp.zeros((vp, e), jnp.float32).at[:v].set(w)
    b_p = jnp.full((vp,), _PAD_BIAS, jnp.float32).at[:v].set(b)
    # emb_p @ w_p.T without an explicit transpose (contract on the E axis).
    table = jax.lax.dot_general(
        emb_p, w_p, (((1,), (1,)), ((), ())),
        precision=jax.lax.Precision.HIGHEST,
        preferred_element_type=jnp.float32) + b_p[None, :]
    return table


def bigram_forward(params, idx, targets=None, table=None, slice_logits=True):
    """Matches BigramLanguageModel.forward semantics.

    Returns (logits, loss). If targets is None: logits is (B, T, V), loss None.
    Otherwise: logits is (B*T, V), loss is a scalar.  Pass `table` to reuse a
    precomputed fold_bigram_table(params).  slice_logits=False defers the
    non-lane-aligned [:, :V] slice and returns the padded (., 128) slab.
    """
    b_sz, t_sz = idx.shape
    n = b_sz * t_sz
    v = params["embedding"].shape[0]
    if table is None:
        table = fold_bigram_table(params)
    idx_flat = idx.reshape(n).astype(jnp.int32)

    if targets is None:
        logits_p = _run_logits(idx_flat, table)
        logits = logits_p[:, :v] if slice_logits else logits_p
        return logits.reshape(b_sz, t_sz, -1), None

    tgt_flat = targets.reshape(n).astype(jnp.int32)
    logits_p, loss = _run_logits_loss(idx_flat, tgt_flat, table)
    logits = logits_p[:, :v] if slice_logits else logits_p
    return logits, loss[0]


def bigram_loss(params, idx, targets, table=None):
    """Loss-only fast path: no logits materialized / written to HBM."""
    n = idx.shape[0] * idx.shape[1]
    if table is None:
        table = fold_bigram_table(params)
    idx_flat = idx.reshape(n).astype(jnp.int32)
    tgt_flat = targets.reshape(n).astype(jnp.int32)
    return _run_loss_only(idx_flat, tgt_flat, table)[0]


# TODO(synk): generate()'s torch.multinomial sampling loop is host-side control
# flow / RNG; a fused last-token decode kernel (gather row of idx[:, -1] +
# Gumbel-max via pltpu.prng_random_bits) is the natural extension but is not
# part of the forward-pass spec, so it is not implemented here.


if __name__ == "__main__":
    vocab_size = 65          # e.g. char-level vocab
    B, T = 2, 8

    key = jax.random.PRNGKey(0)
    k_params, k_idx, k_tgt = jax.random.split(key, 3)
    params = init_params(k_params, vocab_size)
    idx = jax.random.randint(k_idx, (B, T), 0, vocab_size, dtype=jnp.int32)
    targets = jax.random.randint(k_tgt, (B, T), 0, vocab_size, dtype=jnp.int32)

    table = fold_bigram_table(params)      # parameter-only; computed once, reused

    # Pallas forward (with targets -> logits (B*T, V) and scalar loss)
    logits, loss = bigram_forward(params, idx, targets, table=table)
    logits = jax.block_until_ready(logits)
    loss = jax.block_until_ready(loss)

    # Pure-JAX reference for sanity checking.
    tok_emb_ref = params["embedding"][idx.reshape(-1)]                       # (N, E)
    logits_ref = tok_emb_ref @ params["w"].T + params["b"]                   # (N, V)
    lse = jax.scipy.special.logsumexp(logits_ref, axis=-1)
    tgt_flat = targets.reshape(-1)
    loss_ref = jnp.mean(lse - logits_ref[jnp.arange(B * T), tgt_flat])

    assert logits.shape == (B * T, vocab_size)
    assert jnp.allclose(logits, logits_ref, atol=1e-4, rtol=1e-4)
    assert jnp.allclose(loss, loss_ref, atol=1e-4, rtol=1e-4)

    # targets=None path (logits shaped (B, T, V), loss None).
    logits3, loss_none = bigram_forward(params, idx, None, table=table)
    logits3 = jax.block_until_ready(logits3)
    assert logits3.shape == (B, T, vocab_size)
    assert loss_none is None
    assert jnp.allclose(logits3.reshape(B * T, vocab_size), logits_ref,
                        atol=1e-4, rtol=1e-4)

    # Loss-only fast path (no logits writeback).
    loss_only = jax.block_until_ready(bigram_loss(params, idx, targets, table=table))
    assert jnp.allclose(loss_only, loss_ref, atol=1e-4, rtol=1e-4)

    print("KERNEL_OK")
</pallas_src>

<mosaic_0001>
module attributes {stable_mosaic.version = 11 : i64} {
  func.func @_logits_loss_kernel(%arg0: memref<16xi32, #tpu.memory_space<smem>>, %arg1: memref<16xi32, #tpu.memory_space<smem>>, %arg2: memref<128x128xf32, #tpu.memory_space<vmem>>, %arg3: memref<16x128xf32, #tpu.memory_space<vmem>>, %arg4: memref<1xf32, #tpu.memory_space<smem>>, %arg5: memref<16x1xf32, #tpu.memory_space<vmem>>) attributes {dimension_semantics = [], scalar_prefetch = 0 : i64, scratch_operands = 1 : i64, tpu.core_type = #tpu.core_type<tc>} {
    %0 = tpu.iota {dimensions = array<i32: 1>} : vector<1x128xi32>
    %c0 = arith.constant 0 : index
    %1 = memref.load %arg0[%c0] : memref<16xi32, #tpu.memory_space<smem>>
    %2 = arith.index_cast %1 : i32 to index
    %c0_0 = arith.constant 0 : index
    %3 = vector.load %arg2[%2, %c0_0] : memref<128x128xf32, #tpu.memory_space<vmem>>, vector<1x128xf32>
    %c0_1 = arith.constant 0 : index
    %c0_2 = arith.constant 0 : index
    %4 = vector.load %arg3[%c0_1, %c0_2] : memref<16x128xf32, #tpu.memory_space<vmem>>, vector<1x128xf32>
    tpu.vector_store %arg3[%c0_1, %c0_2], %3 {strides = array<i32>} : memref<16x128xf32, #tpu.memory_space<vmem>>, vector<1x128xf32>,
    %c0_3 = arith.constant 0 : index
    %5 = memref.load %arg1[%c0_3] : memref<16xi32, #tpu.memory_space<smem>>
    %6 = vector.broadcast %5 : i32 to vector<1x128xi32>
    %7 = arith.cmpi eq, %0, %6 : vector<1x128xi32>
    %cst = arith.constant 0.000000e+00 : f32
    %8 = vector.broadcast %cst : f32 to vector<1x128xf32>
    %9 = arith.select %7, %3, %8 : vector<1x128xi1>, vector<1x128xf32>
    %cst_4 = arith.constant dense<0.000000e+00> : vector<1xf32>
    %10 = vector.multi_reduction <add>, %9, %cst_4 [1] : vector<1x128xf32> to vector<1xf32>
    %11 = vector.shape_cast %10 : vector<1xf32> to vector<1x1xf32>
    %c0_5 = arith.constant 0 : index
    %c0_6 = arith.constant 0 : index
    %12 = vector.load %arg5[%c0_5, %c0_6] : memref<16x1xf32, #tpu.memory_space<vmem>>, vector<1x1xf32>
    tpu.vector_store %arg5[%c0_5, %c0_6], %11 {strides = array<i32>} : memref<16x1xf32, #tpu.memory_space<vmem>>, vector<1x1xf32>,
    %c1 = arith.constant 1 : index
    %13 = memref.load %arg0[%c1] : memref<16xi32, #tpu.memory_space<smem>>
    %14 = arith.index_cast %13 : i32 to index
    %c0_7 = arith.constant 0 : index
    %15 = vector.load %arg2[%14, %c0_7] : memref<128x128xf32, #tpu.memory_space<vmem>>, vector<1x128xf32>
    %c1_8 = arith.constant 1 : index
    %c0_9 = arith.constant 0 : index
    %16 = vector.load %arg3[%c1_8, %c0_9] : memref<16x128xf32, #tpu.memory_space<vmem>>, vector<1x128xf32>
    tpu.vector_store %arg3[%c1_8, %c0_9], %15 {strides = array<i32>} : memref<16x128xf32, #tpu.memory_space<vmem>>, vector<1x128xf32>,
    %c1_10 = arith.constant 1 : index
    %17 = memref.load %arg1[%c1_10] : memref<16xi32, #tpu.memory_space<smem>>
    %18 = vector.broadcast %17 : i32 to vector<1x128xi32>
    %19 = arith.cmpi eq, %0, %18 : vector<1x128xi32>
    %cst_11 = arith.constant 0.000000e+00 : f32
    %20 = vector.broadcast %cst_11 : f32 to vector<1x128xf32>
    %21 = arith.select %19, %15, %20 : vector<1x128xi1>, vector<1x128xf32>
    %cst_12 = arith.constant dense<0.000000e+00> : vector<1xf32>
    %22 = vector.multi_reduction <add>, %21, %cst_12 [1] : vector<1x128xf32> to vector<1xf32>
    %23 = vector.shape_cast %22 : vector<1xf32> to vector<1x1xf32>
    %c1_13 = arith.constant 1 : index
    %c0_14 = arith.constant 0 : index
    %24 = vector.load %arg5[%c1_13, %c0_14] : memref<16x1xf32, #tpu.memory_space<vmem>>, vector<1x1xf32>
    tpu.vector_store %arg5[%c1_13, %c0_14], %23 {strides = array<i32>} : memref<16x1xf32, #tpu.memory_space<vmem>>, vector<1x1xf32>,
    %c2 = arith.constant 2 : index
    %25 = memref.load %arg0[%c2] : memref<16xi32, #tpu.memory_space<smem>>
    %26 = arith.index_cast %25 : i32 to index
    %c0_15 = arith.constant 0 : index
    %27 = vector.load %arg2[%26, %c0_15] : memref<128x128xf32, #tpu.memory_space<vmem>>, vector<1x128xf32>
    %c2_16 = arith.constant 2 : index
    %c0_17 = arith.constant 0 : index
    %28 = vector.load %arg3[%c2_16, %c0_17] : memref<16x128xf32, #tpu.memory_space<vmem>>, vector<1x128xf32>
    tpu.vector_store %arg3[%c2_16, %c0_17], %27 {strides = array<i32>} : memref<16x128xf32, #tpu.memory_space<vmem>>, vector<1x128xf32>,
    %c2_18 = arith.constant 2 : index
    %29 = memref.load %arg1[%c2_18] : memref<16xi32, #tpu.memory_space<smem>>
    %30 = vector.broadcast %29 : i32 to vector<1x128xi32>
    %31 = arith.cmpi eq, %0, %30 : vector<1x128xi32>
    %cst_19 = arith.constant 0.000000e+00 : f32
    %32 = vector.broadcast %cst_19 : f32 to vector<1x128xf32>
    %33 = arith.select %31, %27, %32 : vector<1x128xi1>, vector<1x128xf32>
    %cst_20 = arith.constant dense<0.000000e+00> : vector<1xf32>
    %34 = vector.multi_reduction <add>, %33, %cst_20 [1] : vector<1x128xf32> to vector<1xf32>
    %35 = vector.shape_cast %34 : vector<1xf32> to vector<1x1xf32>
    %c2_21 = arith.constant 2 : index
    %c0_22 = arith.constant 0 : index
    %36 = vector.load %arg5[%c2_21, %c0_22] : memref<16x1xf32, #tpu.memory_space<vmem>>, vector<1x1xf32>
    tpu.vector_store %arg5[%c2_21, %c0_22], %35 {strides = array<i32>} : memref<16x1xf32, #tpu.memory_space<vmem>>, vector<1x1xf32>,
    %c3 = arith.constant 3 : index
    %37 = memref.load %arg0[%c3] : memref<16xi32, #tpu.memory_space<smem>>
    %38 = arith.index_cast %37 : i32 to index
    %c0_23 = arith.constant 0 : index
    %39 = vector.load %arg2[%38, %c0_23] : memref<128x128xf32, #tpu.memory_space<vmem>>, vector<1x128xf32>
    %c3_24 = arith.constant 3 : index
    %c0_25 = arith.constant 0 : index
    %40 = vector.load %arg3[%c3_24, %c0_25] : memref<16x128xf32, #tpu.memory_space<vmem>>, vector<1x128xf32>
    tpu.vector_store %arg3[%c3_24, %c0_25], %39 {strides = array<i32>} : memref<16x128xf32, #tpu.memory_space<vmem>>, vector<1x128xf32>,
    %c3_26 = arith.constant 3 : index
    %41 = memref.load %arg1[%c3_26] : memref<16xi32, #tpu.memory_space<smem>>
    %42 = vector.broadcast %41 : i32 to vector<1x128xi32>
    %43 = arith.cmpi eq, %0, %42 : vector<1x128xi32>
    %cst_27 = arith.constant 0.000000e+00 : f32
    %44 = vector.broadcast %cst_27 : f32 to vector<1x128xf32>
    %45 = arith.select %43, %39, %44 : vector<1x128xi1>, vector<1x128xf32>
    %cst_28 = arith.constant dense<0.000000e+00> : vector<1xf32>
    %46 = vector.multi_reduction <add>, %45, %cst_28 [1] : vector<1x128xf32> to vector<1xf32>
    %47 = vector.shape_cast %46 : vector<1xf32> to vector<1x1xf32>
    %c3_29 = arith.constant 3 : index
    %c0_30 = arith.constant 0 : index
    %48 = vector.load %arg5[%c3_29, %c0_30] : memref<16x1xf32, #tpu.memory_space<vmem>>, vector<1x1xf32>
    tpu.vector_store %arg5[%c3_29, %c0_30], %47 {strides = array<i32>} : memref<16x1xf32, #tpu.memory_space<vmem>>, vector<1x1xf32>,
    %c4 = arith.constant 4 : index
    %49 = memref.load %arg0[%c4] : memref<16xi32, #tpu.memory_space<smem>>
    %50 = arith.index_cast %49 : i32 to index
    %c0_31 = arith.constant 0 : index
    %51 = vector.load %arg2[%50, %c0_31] : memref<128x128xf32, #tpu.memory_space<vmem>>, vector<1x128xf32>
    %c4_32 = arith.constant 4 : index
    %c0_33 = arith.constant 0 : index
    %52 = vector.load %arg3[%c4_32, %c0_33] : memref<16x128xf32, #tpu.memory_space<vmem>>, vector<1x128xf32>
    tpu.vector_store %arg3[%c4_32, %c0_33], %51 {strides = array<i32>} : memref<16x128xf32, #tpu.memory_space<vmem>>, vector<1x128xf32>,
    %c4_34 = arith.constant 4 : index
    %53 = memref.load %arg1[%c4_34] : memref<16xi32, #tpu.memory_space<smem>>
    %54 = vector.broadcast %53 : i32 to vector<1x128xi32>
    %55 = arith.cmpi eq, %0, %54 : vector<1x128xi32>
    %cst_35 = arith.constant 0.000000e+00 : f32
    %56 = vector.broadcast %cst_35 : f32 to vector<1x128xf32>
    %57 = arith.select %55, %51, %56 : vector<1x128xi1>, vector<1x128xf32>
    %cst_36 = arith.constant dense<0.000000e+00> : vector<1xf32>
    %58 = vector.multi_reduction <add>, %57, %cst_36 [1] : vector<1x128xf32> to vector<1xf32>
    %59 = vector.shape_cast %58 : vector<1xf32> to vector<1x1xf32>
    %c4_37 = arith.constant 4 : index
    %c0_38 = arith.constant 0 : index
    %60 = vector.load %arg5[%c4_37, %c0_38] : memref<16x1xf32, #tpu.memory_space<vmem>>, vector<1x1xf32>
    tpu.vector_store %arg5[%c4_37, %c0_38], %59 {strides = array<i32>} : memref<16x1xf32, #tpu.memory_space<vmem>>, vector<1x1xf32>,
    %c5 = arith.constant 5 : index
    %61 = memref.load %arg0[%c5] : memref<16xi32, #tpu.memory_space<smem>>
    %62 = arith.index_cast %61 : i32 to index
    %c0_39 = arith.constant 0 : index
    %63 = vector.load %arg2[%62, %c0_39] : memref<128x128xf32, #tpu.memory_space<vmem>>, vector<1x128xf32>
    %c5_40 = arith.constant 5 : index
    %c0_41 = arith.constant 0 : index
    %64 = vector.load %arg3[%c5_40, %c0_41] : memref<16x128xf32, #tpu.memory_space<vmem>>, vector<1x128xf32>
    tpu.vector_store %arg3[%c5_40, %c0_41], %63 {strides = array<i32>} : memref<16x128xf32, #tpu.memory_space<vmem>>, vector<1x128xf32>,
    %c5_42 = arith.constant 5 : index
    %65 = memref.load %arg1[%c5_42] : memref<16xi32, #tpu.memory_space<smem>>
    %66 = vector.broadcast %65 : i32 to vector<1x128xi32>
    %67 = arith.cmpi eq, %0, %66 : vector<1x128xi32>
    %cst_43 = arith.constant 0.000000e+00 : f32
    %68 = vector.broadcast %cst_43 : f32 to vector<1x128xf32>
    %69 = arith.select %67, %63, %68 : vector<1x128xi1>, vector<1x128xf32>
    %cst_44 = arith.constant dense<0.000000e+00> : vector<1xf32>
    %70 = vector.multi_reduction <add>, %69, %cst_44 [1] : vector<1x128xf32> to vector<1xf32>
    %71 = vector.shape_cast %70 : vector<1xf32> to vector<1x1xf32>
    %c5_45 = arith.constant 5 : index
    %c0_46 = arith.constant 0 : index
    %72 = vector.load %arg5[%c5_45, %c0_46] : memref<16x1xf32, #tpu.memory_space<vmem>>, vector<1x1xf32>
    tpu.vector_store %arg5[%c5_45, %c0_46], %71 {strides = array<i32>} : memref<16x1xf32, #tpu.memory_space<vmem>>, vector<1x1xf32>,
    %c6 = arith.constant 6 : index
    %73 = memref.load %arg0[%c6] : memref<16xi32, #tpu.memory_space<smem>>
    %74 = arith.index_cast %73 : i32 to index
    %c0_47 = arith.constant 0 : index
    %75 = vector.load %arg2[%74, %c0_47] : memref<128x128xf32, #tpu.memory_space<vmem>>, vector<1x128xf32>
    %c6_48 = arith.constant 6 : index
    %c0_49 = arith.constant 0 : index
    %76 = vector.load %arg3[%c6_48, %c0_49] : memref<16x128xf32, #tpu.memory_space<vmem>>, vector<1x128xf32>
    tpu.vector_store %arg3[%c6_48, %c0_49], %75 {strides = array<i32>} : memref<16x128xf32, #tpu.memory_space<vmem>>, vector<1x128xf32>,
    %c6_50 = arith.constant 6 : index
    %77 = memref.load %arg1[%c6_50] : memref<16xi32, #tpu.memory_space<smem>>
    %78 = vector.broadcast %77 : i32 to vector<1x128xi32>
    %79 = arith.cmpi eq, %0, %78 : vector<1x128xi32>
    %cst_51 = arith.constant 0.000000e+00 : f32
    %80 = vector.broadcast %cst_51 : f32 to vector<1x128xf32>
    %81 = arith.select %79, %75, %80 : vector<1x128xi1>, vector<1x128xf32>
    %cst_52 = arith.constant dense<0.000000e+00> : vector<1xf32>
    %82 = vector.multi_reduction <add>, %81, %cst_52 [1] : vector<1x128xf32> to vector<1xf32>
    %83 = vector.shape_cast %82 : vector<1xf32> to vector<1x1xf32>
    %c6_53 = arith.constant 6 : index
    %c0_54 = arith.constant 0 : index
    %84 = vector.load %arg5[%c6_53, %c0_54] : memref<16x1xf32, #tpu.memory_space<vmem>>, vector<1x1xf32>
    tpu.vector_store %arg5[%c6_53, %c0_54], %83 {strides = array<i32>} : memref<16x1xf32, #tpu.memory_space<vmem>>, vector<1x1xf32>,
    %c7 = arith.constant 7 : index
    %85 = memref.load %arg0[%c7] : memref<16xi32, #tpu.memory_space<smem>>
    %86 = arith.index_cast %85 : i32 to index
    %c0_55 = arith.constant 0 : index
    %87 = vector.load %arg2[%86, %c0_55] : memref<128x128xf32, #tpu.memory_space<vmem>>, vector<1x128xf32>
    %c7_56 = arith.constant 7 : index
    %c0_57 = arith.constant 0 : index
    %88 = vector.load %arg3[%c7_56, %c0_57] : memref<16x128xf32, #tpu.memory_space<vmem>>, vector<1x128xf32>
    tpu.vector_store %arg3[%c7_56, %c0_57], %87 {strides = array<i32>} : memref<16x128xf32, #tpu.memory_space<vmem>>, vector<1x128xf32>,
    %c7_58 = arith.constant 7 : index
    %89 = memref.load %arg1[%c7_58] : memref<16xi32, #tpu.memory_space<smem>>
    %90 = vector.broadcast %89 : i32 to vector<1x128xi32>
    %91 = arith.cmpi eq, %0, %90 : vector<1x128xi32>
    %cst_59 = arith.constant 0.000000e+00 : f32
    %92 = vector.broadcast %cst_59 : f32 to vector<1x128xf32>
    %93 = arith.select %91, %87, %92 : vector<1x128xi1>, vector<1x128xf32>
    %cst_60 = arith.constant dense<0.000000e+00> : vector<1xf32>
    %94 = vector.multi_reduction <add>, %93, %cst_60 [1] : vector<1x128xf32> to vector<1xf32>
    %95 = vector.shape_cast %94 : vector<1xf32> to vector<1x1xf32>
    %c7_61 = arith.constant 7 : index
    %c0_62 = arith.constant 0 : index
    %96 = vector.load %arg5[%c7_61, %c0_62] : memref<16x1xf32, #tpu.memory_space<vmem>>, vector<1x1xf32>
    tpu.vector_store %arg5[%c7_61, %c0_62], %95 {strides = array<i32>} : memref<16x1xf32, #tpu.memory_space<vmem>>, vector<1x1xf32>,
    %c8 = arith.constant 8 : index
    %97 = memref.load %arg0[%c8] : memref<16xi32, #tpu.memory_space<smem>>
    %98 = arith.index_cast %97 : i32 to index
    %c0_63 = arith.constant 0 : index
    %99 = vector.load %arg2[%98, %c0_63] : memref<128x128xf32, #tpu.memory_space<vmem>>, vector<1x128xf32>
    %c8_64 = arith.constant 8 : index
    %c0_65 = arith.constant 0 : index
    %100 = vector.load %arg3[%c8_64, %c0_65] : memref<16x128xf32, #tpu.memory_space<vmem>>, vector<1x128xf32>
    tpu.vector_store %arg3[%c8_64, %c0_65], %99 {strides = array<i32>} : memref<16x128xf32, #tpu.memory_space<vmem>>, vector<1x128xf32>,
    %c8_66 = arith.constant 8 : index
    %101 = memref.load %arg1[%c8_66] : memref<16xi32, #tpu.memory_space<smem>>
    %102 = vector.broadcast %101 : i32 to vector<1x128xi32>
    %103 = arith.cmpi eq, %0, %102 : vector<1x128xi32>
    %cst_67 = arith.constant 0.000000e+00 : f32
    %104 = vector.broadcast %cst_67 : f32 to vector<1x128xf32>
    %105 = arith.select %103, %99, %104 : vector<1x128xi1>, vector<1x128xf32>
    %cst_68 = arith.constant dense<0.000000e+00> : vector<1xf32>
    %106 = vector.multi_reduction <add>, %105, %cst_68 [1] : vector<1x128xf32> to vector<1xf32>
    %107 = vector.shape_cast %106 : vector<1xf32> to vector<1x1xf32>
    %c8_69 = arith.constant 8 : index
    %c0_70 = arith.constant 0 : index
    %108 = vector.load %arg5[%c8_69, %c0_70] : memref<16x1xf32, #tpu.memory_space<vmem>>, vector<1x1xf32>
    tpu.vector_store %arg5[%c8_69, %c0_70], %107 {strides = array<i32>} : memref<16x1xf32, #tpu.memory_space<vmem>>, vector<1x1xf32>,
    %c9 = arith.constant 9 : index
    %109 = memref.load %arg0[%c9] : memref<16xi32, #tpu.memory_space<smem>>
    %110 = arith.index_cast %109 : i32 to index
    %c0_71 = arith.constant 0 : index
    %111 = vector.load %arg2[%110, %c0_71] : memref<128x128xf32, #tpu.memory_space<vmem>>, vector<1x128xf32>
    %c9_72 = arith.constant 9 : index
    %c0_73 = arith.constant 0 : index
    %112 = vector.load %arg3[%c9_72, %c0_73] : memref<16x128xf32, #tpu.memory_space<vmem>>, vector<1x128xf32>
    tpu.vector_store %arg3[%c9_72, %c0_73], %111 {strides = array<i32>} : memref<16x128xf32, #tpu.memory_space<vmem>>, vector<1x128xf32>,
    %c9_74 = arith.constant 9 : index
    %113 = memref.load %arg1[%c9_74] : memref<16xi32, #tpu.memory_space<smem>>
    %114 = vector.broadcast %113 : i32 to vector<1x128xi32>
    %115 = arith.cmpi eq, %0, %114 : vector<1x128xi32>
    %cst_75 = arith.constant 0.000000e+00 : f32
    %116 = vector.broadcast %cst_75 : f32 to vector<1x128xf32>
    %117 = arith.select %115, %111, %116 : vector<1x128xi1>, vector<1x128xf32>
    %cst_76 = arith.constant dense<0.000000e+00> : vector<1xf32>
    %118 = vector.multi_reduction <add>, %117, %cst_76 [1] : vector<1x128xf32> to vector<1xf32>
    %119 = vector.shape_cast %118 : vector<1xf32> to vector<1x1xf32>
    %c9_77 = arith.constant 9 : index
    %c0_78 = arith.constant 0 : index
    %120 = vector.load %arg5[%c9_77, %c0_78] : memref<16x1xf32, #tpu.memory_space<vmem>>, vector<1x1xf32>
    tpu.vector_store %arg5[%c9_77, %c0_78], %119 {strides = array<i32>} : memref<16x1xf32, #tpu.memory_space<vmem>>, vector<1x1xf32>,
    %c10 = arith.constant 10 : index
    %121 = memref.load %arg0[%c10] : memref<16xi32, #tpu.memory_space<smem>>
    %122 = arith.index_cast %121 : i32 to index
    %c0_79 = arith.constant 0 : index
    %123 = vector.load %arg2[%122, %c0_79] : memref<128x128xf32, #tpu.memory_space<vmem>>, vector<1x128xf32>
    %c10_80 = arith.constant 10 : index
    %c0_81 = arith.constant 0 : index
    %124 = vector.load %arg3[%c10_80, %c0_81] : memref<16x128xf32, #tpu.memory_space<vmem>>, vector<1x128xf32>
    tpu.vector_store %arg3[%c10_80, %c0_81], %123 {strides = array<i32>} : memref<16x128xf32, #tpu.memory_space<vmem>>, vector<1x128xf32>,
    %c10_82 = arith.constant 10 : index
    %125 = memref.load %arg1[%c10_82] : memref<16xi32, #tpu.memory_space<smem>>
    %126 = vector.broadcast %125 : i32 to vector<1x128xi32>
    %127 = arith.cmpi eq, %0, %126 : vector<1x128xi32>
    %cst_83 = arith.constant 0.000000e+00 : f32
    %128 = vector.broadcast %cst_83 : f32 to vector<1x128xf32>
    %129 = arith.select %127, %123, %128 : vector<1x128xi1>, vector<1x128xf32>
    %cst_84 = arith.constant dense<0.000000e+00> : vector<1xf32>
    %130 = vector.multi_reduction <add>, %129, %cst_84 [1] : vector<1x128xf32> to vector<1xf32>
    %131 = vector.shape_cast %130 : vector<1xf32> to vector<1x1xf32>
    %c10_85 = arith.constant 10 : index
    %c0_86 = arith.constant 0 : index
    %132 = vector.load %arg5[%c10_85, %c0_86] : memref<16x1xf32, #tpu.memory_space<vmem>>, vector<1x1xf32>
    tpu.vector_store %arg5[%c10_85, %c0_86], %131 {strides = array<i32>} : memref<16x1xf32, #tpu.memory_space<vmem>>, vector<1x1xf32>,
    %c11 = arith.constant 11 : index
    %133 = memref.load %arg0[%c11] : memref<16xi32, #tpu.memory_space<smem>>
    %134 = arith.index_cast %133 : i32 to index
    %c0_87 = arith.constant 0 : index
    %135 = vector.load %arg2[%134, %c0_87] : memref<128x128xf32, #tpu.memory_space<vmem>>, vector<1x128xf32>
    %c11_88 = arith.constant 11 : index
    %c0_89 = arith.constant 0 : index
    %136 = vector.load %arg3[%c11_88, %c0_89] : memref<16x128xf32, #tpu.memory_space<vmem>>, vector<1x128xf32>
    tpu.vector_store %arg3[%c11_88, %c0_89], %135 {strides = array<i32>} : memref<16x128xf32, #tpu.memory_space<vmem>>, vector<1x128xf32>,
    %c11_90 = arith.constant 11 : index
    %137 = memref.load %arg1[%c11_90] : memref<16xi32, #tpu.memory_space<smem>>
    %138 = vector.broadcast %137 : i32 to vector<1x128xi32>
    %139 = arith.cmpi eq, %0, %138 : vector<1x128xi32>
    %cst_91 = arith.constant 0.000000e+00 : f32
    %140 = vector.broadcast %cst_91 : f32 to vector<1x128xf32>
    %141 = arith.select %139, %135, %140 : vector<1x128xi1>, vector<1x128xf32>
    %cst_92 = arith.constant dense<0.000000e+00> : vector<1xf32>
    %142 = vector.multi_reduction <add>, %141, %cst_92 [1] : vector<1x128xf32> to vector<1xf32>
    %143 = vector.shape_cast %142 : vector<1xf32> to vector<1x1xf32>
    %c11_93 = arith.constant 11 : index
    %c0_94 = arith.constant 0 : index
    %144 = vector.load %arg5[%c11_93, %c0_94] : memref<16x1xf32, #tpu.memory_space<vmem>>, vector<1x1xf32>
    tpu.vector_store %arg5[%c11_93, %c0_94], %143 {strides = array<i32>} : memref<16x1xf32, #tpu.memory_space<vmem>>, vector<1x1xf32>,
    %c12 = arith.constant 12 : index
    %145 = memref.load %arg0[%c12] : memref<16xi32, #tpu.memory_space<smem>>
    %146 = arith.index_cast %145 : i32 to index
    %c0_95 = arith.constant 0 : index
    %147 = vector.load %arg2[%146, %c0_95] : memref<128x128xf32, #tpu.memory_space<vmem>>, vector<1x128xf32>
    %c12_96 = arith.constant 12 : index
    %c0_97 = arith.constant 0 : index
    %148 = vector.load %arg3[%c12_96, %c0_97] : memref<16x128xf32, #tpu.memory_space<vmem>>, vector<1x128xf32>
    tpu.vector_store %arg3[%c12_96, %c0_97], %147 {strides = array<i32>} : memref<16x128xf32, #tpu.memory_space<vmem>>, vector<1x128xf32>,
    %c12_98 = arith.constant 12 : index
    %149 = memref.load %arg1[%c12_98] : memref<16xi32, #tpu.memory_space<smem>>
    %150 = vector.broadcast %149 : i32 to vector<1x128xi32>
    %151 = arith.cmpi eq, %0, %150 : vector<1x128xi32>
    %cst_99 = arith.constant 0.000000e+00 : f32
    %152 = vector.broadcast %cst_99 : f32 to vector<1x128xf32>
    %153 = arith.select %151, %147, %152 : vector<1x128xi1>, vector<1x128xf32>
    %cst_100 = arith.constant dense<0.000000e+00> : vector<1xf32>
    %154 = vector.multi_reduction <add>, %153, %cst_100 [1] : vector<1x128xf32> to vector<1xf32>
    %155 = vector.shape_cast %154 : vector<1xf32> to vector<1x1xf32>
    %c12_101 = arith.constant 12 : index
    %c0_102 = arith.constant 0 : index
    %156 = vector.load %arg5[%c12_101, %c0_102] : memref<16x1xf32, #tpu.memory_space<vmem>>, vector<1x1xf32>
    tpu.vector_store %arg5[%c12_101, %c0_102], %155 {strides = array<i32>} : memref<16x1xf32, #tpu.memory_space<vmem>>, vector<1x1xf32>,
    %c13 = arith.constant 13 : index
    %157 = memref.load %arg0[%c13] : memref<16xi32, #tpu.memory_space<smem>>
    %158 = arith.index_cast %157 : i32 to index
    %c0_103 = arith.constant 0 : index
    %159 = vector.load %arg2[%158, %c0_103] : memref<128x128xf32, #tpu.memory_space<vmem>>, vector<1x128xf32>
    %c13_104 = arith.constant 13 : index
    %c0_105 = arith.constant 0 : index
    %160 = vector.load %arg3[%c13_104, %c0_105] : memref<16x128xf32, #tpu.memory_space<vmem>>, vector<1x128xf32>
    tpu.vector_store %arg3[%c13_104, %c0_105], %159 {strides = array<i32>} : memref<16x128xf32, #tpu.memory_space<vmem>>, vector<1x128xf32>,
    %c13_106 = arith.constant 13 : index
    %161 = memref.load %arg1[%c13_106] : memref<16xi32, #tpu.memory_space<smem>>
    %162 = vector.broadcast %161 : i32 to vector<1x128xi32>
    %163 = arith.cmpi eq, %0, %162 : vector<1x128xi32>
    %cst_107 = arith.constant 0.000000e+00 : f32
    %164 = vector.broadcast %cst_107 : f32 to vector<1x128xf32>
    %165 = arith.select %163, %159, %164 : vector<1x128xi1>, vector<1x128xf32>
    %cst_108 = arith.constant dense<0.000000e+00> : vector<1xf32>
    %166 = vector.multi_reduction <add>, %165, %cst_108 [1] : vector<1x128xf32> to vector<1xf32>
    %167 = vector.shape_cast %166 : vector<1xf32> to vector<1x1xf32>
    %c13_109 = arith.constant 13 : index
    %c0_110 = arith.constant 0 : index
    %168 = vector.load %arg5[%c13_109, %c0_110] : memref<16x1xf32, #tpu.memory_space<vmem>>, vector<1x1xf32>
    tpu.vector_store %arg5[%c13_109, %c0_110], %167 {strides = array<i32>} : memref<16x1xf32, #tpu.memory_space<vmem>>, vector<1x1xf32>,
    %c14 = arith.constant 14 : index
    %169 = memref.load %arg0[%c14] : memref<16xi32, #tpu.memory_space<smem>>
    %170 = arith.index_cast %169 : i32 to index
    %c0_111 = arith.constant 0 : index
    %171 = vector.load %arg2[%170, %c0_111] : memref<128x128xf32, #tpu.memory_space<vmem>>, vector<1x128xf32>
    %c14_112 = arith.constant 14 : index
    %c0_113 = arith.constant 0 : index
    %172 = vector.load %arg3[%c14_112, %c0_113] : memref<16x128xf32, #tpu.memory_space<vmem>>, vector<1x128xf32>
    tpu.vector_store %arg3[%c14_112, %c0_113], %171 {strides = array<i32>} : memref<16x128xf32, #tpu.memory_space<vmem>>, vector<1x128xf32>,
    %c14_114 = arith.constant 14 : index
    %173 = memref.load %arg1[%c14_114] : memref<16xi32, #tpu.memory_space<smem>>
    %174 = vector.broadcast %173 : i32 to vector<1x128xi32>
    %175 = arith.cmpi eq, %0, %174 : vector<1x128xi32>
    %cst_115 = arith.constant 0.000000e+00 : f32
    %176 = vector.broadcast %cst_115 : f32 to vector<1x128xf32>
    %177 = arith.select %175, %171, %176 : vector<1x128xi1>, vector<1x128xf32>
    %cst_116 = arith.constant dense<0.000000e+00> : vector<1xf32>
    %178 = vector.multi_reduction <add>, %177, %cst_116 [1] : vector<1x128xf32> to vector<1xf32>
    %179 = vector.shape_cast %178 : vector<1xf32> to vector<1x1xf32>
    %c14_117 = arith.constant 14 : index
    %c0_118 = arith.constant 0 : index
    %180 = vector.load %arg5[%c14_117, %c0_118] : memref<16x1xf32, #tpu.memory_space<vmem>>, vector<1x1xf32>
    tpu.vector_store %arg5[%c14_117, %c0_118], %179 {strides = array<i32>} : memref<16x1xf32, #tpu.memory_space<vmem>>, vector<1x1xf32>,
    %c15 = arith.constant 15 : index
    %181 = memref.load %arg0[%c15] : memref<16xi32, #tpu.memory_space<smem>>
    %182 = arith.index_cast %181 : i32 to index
    %c0_119 = arith.constant 0 : index
    %183 = vector.load %arg2[%182, %c0_119] : memref<128x128xf32, #tpu.memory_space<vmem>>, vector<1x128xf32>
    %c15_120 = arith.constant 15 : index
    %c0_121 = arith.constant 0 : index
    %184 = vector.load %arg3[%c15_120, %c0_121] : memref<16x128xf32, #tpu.memory_space<vmem>>, vector<1x128xf32>
    tpu.vector_store %arg3[%c15_120, %c0_121], %183 {strides = array<i32>} : memref<16x128xf32, #tpu.memory_space<vmem>>, vector<1x128xf32>,
    %c15_122 = arith.constant 15 : index
    %185 = memref.load %arg1[%c15_122] : memref<16xi32, #tpu.memory_space<smem>>
    %186 = vector.broadcast %185 : i32 to vector<1x128xi32>
    %187 = arith.cmpi eq, %0, %186 : vector<1x128xi32>
    %cst_123 = arith.constant 0.000000e+00 : f32
    %188 = vector.broadcast %cst_123 : f32 to vector<1x128xf32>
    %189 = arith.select %187, %183, %188 : vector<1x128xi1>, vector<1x128xf32>
    %cst_124 = arith.constant dense<0.000000e+00> : vector<1xf32>
    %190 = vector.multi_reduction <add>, %189, %cst_124 [1] : vector<1x128xf32> to vector<1xf32>
    %191 = vector.shape_cast %190 : vector<1xf32> to vector<1x1xf32>
    %c15_125 = arith.constant 15 : index
    %c0_126 = arith.constant 0 : index
    %192 = vector.load %arg5[%c15_125, %c0_126] : memref<16x1xf32, #tpu.memory_space<vmem>>, vector<1x1xf32>
    tpu.vector_store %arg5[%c15_125, %c0_126], %191 {strides = array<i32>} : memref<16x1xf32, #tpu.memory_space<vmem>>, vector<1x1xf32>,
    %c0_127 = arith.constant 0 : index
    %c0_128 = arith.constant 0 : index
    %193 = vector.load %arg3[%c0_127, %c0_128] : memref<16x128xf32, #tpu.memory_space<vmem>>, vector<16x128xf32>
    %cst_129 = arith.constant dense<0xFF800000> : vector<16xf32>
    %194 = vector.multi_reduction <maximumf>, %193, %cst_129 [1] : vector<16x128xf32> to vector<16xf32>
    %195 = vector.shape_cast %194 : vector<16xf32> to vector<16x1xf32>
    %196 = vector.broadcast %195 : vector<16x1xf32> to vector<16x128xf32>
    %197 = arith.subf %193, %196 : vector<16x128xf32>
    %198 = math.exp %197 : vector<16x128xf32>
    %cst_130 = arith.constant dense<0.000000e+00> : vector<16xf32>
    %199 = vector.multi_reduction <add>, %198, %cst_130 [1] : vector<16x128xf32> to vector<16xf32>
    %200 = vector.shape_cast %199 : vector<16xf32> to vector<16x1xf32>
    %201 = math.log %200 : vector<16x1xf32>
    %202 = arith.addf %195, %201 : vector<16x1xf32>
    %c0_131 = arith.constant 0 : index
    %c0_132 = arith.constant 0 : index
    %203 = vector.load %arg5[%c0_131, %c0_132] : memref<16x1xf32, #tpu.memory_space<vmem>>, vector<16x1xf32>
    %204 = arith.subf %202, %203 : vector<16x1xf32>
    %205 = vector.shape_cast %204 : vector<16x1xf32> to vector<1x16x1xf32>
    %cst_133 = arith.constant dense<0.000000e+00> : vector<1xf32>
    %206 = vector.multi_reduction <add>, %205, %cst_133 [1, 2] : vector<1x16x1xf32> to vector<1xf32>
    %207 = vector.shape_cast %206 : vector<1xf32> to vector<1x1x1xf32>
    %208 = vector.extract %207[0, 0, 0] : f32 from vector<1x1x1xf32>
    %cst_134 = arith.constant 1.600000e+01 : f32
    %209 = arith.divf %208, %cst_134 : f32
    %c0_135 = arith.constant 0 : index
    %210 = memref.load %arg4[%c0_135] : memref<1xf32, #tpu.memory_space<smem>>
    memref.store %209, %arg4[%c0_135] : memref<1xf32, #tpu.memory_space<smem>>
    return
  }
}

</mosaic_0001>

<llo_original>
// kernel: tpu_custom_call.1
$region0: #{tpu_custom_call.1}
  #allocation0 [shape = 'u32[]', space=smem, size = 0x4, offset = 0x4, fixed_abs, tag = 'smem constant byte address 0x4 - core index']
  #allocation1 [shape = 'u32[144,128]{1,0:T(1,128)}', space=vmem, size = 0x12000, scoped, tag = 'internal scratch']
  #allocation2 [shape = 'f32[16,1]{1,0:T(8,128)}', space=vmem, size = 0x2000, scoped, tag = 'scratch operand']
  %s0 = inlined_call_operand.hbm [shape: s32[16], index: 0, kind: input, shape index: {}]
  %s1 = inlined_call_operand.vmem [shape: s32[16], index: 1, kind: input, shape index: {}]
  %s2 = inlined_call_operand.hbm [shape: f32[128,128], index: 2, kind: input, shape index: {}]
  %s3 = inlined_call_operand.hbm [shape: f32[16,128], index: 3, kind: output, shape index: {0}]
  %s4 = inlined_call_operand.hbm [shape: f32[1], index: 4, kind: output, shape index: {1}]
  %5 = xla_tuple %s3, %s4
  %s6 = sld [smem:[#allocation0]]
  $region42: #{tpu_custom_call.1} parent=0
    _
  %s8 = ssub.s32 1, %s6
  %s9 = scalar_select 0, %s8, %s6
  $region1: #{tpu_custom_call.1} parent=0
    #allocation3 [shape = 'u8[512]{0}', space=smem, size = 0x200, scoped, tag = 'input window, operand 0, single buffered']
    #allocation4 [shape = 's32[1]{0}', space=sflag, size = 0x4, scoped, tag = 'scoped memory for tpu_custom_call.1']
    #allocation5 [shape = 's32[1]{0}', space=sflag, size = 0x4, scoped, tag = 'scoped memory for tpu_custom_call.1']
    #allocation6 [shape = 's32[1]{0}', space=sflag, size = 0x4, scoped, tag = 'scoped memory for tpu_custom_call.1']
    #allocation7 [shape = 's32[1]{0}', space=sflag, size = 0x4, scoped, tag = 'scoped memory for tpu_custom_call.1']
    #allocation8 [shape = 's32[1]{0}', space=sflag, size = 0x4, scoped, tag = 'scoped memory for tpu_custom_call.1']
    #allocation9 [shape = 'u8[512]{0}', space=smem, size = 0x200, scoped, tag = 'input window, operand 1, single buffered']
    #allocation10 [shape = 'u8[65536]{0}', space=vmem, size = 0x10000, scoped, tag = 'input window, operand 2, single buffered']
    #allocation11 [shape = 'u8[8192]{0}', space=vmem, size = 0x2000, scoped, tag = 'output window, operand 0, single buffered']
    #allocation12 [shape = 'u8[512]{0}', space=smem, size = 0x200, scoped, tag = 'output window, operand 1, single buffered']
    %10 = vsyncpa [#allocation6], 0
    %11 = vsyncpa [#allocation8], 0
    %12 = vsyncpa [#allocation4], 0
    %13 = vsyncpa [#allocation5], 0
    %14 = vsyncpa [#allocation7], 0
    // Predicated region
    $region2: #{tpu_custom_call.1} parent=1 // pred_check
      _
    $region3: #{tpu_custom_call.1} parent=1 // pred_check_branch
      %16 = sbr.rel (0) target = $region5
    $region4: #{tpu_custom_call.1} parent=1 // pred_region
      %s18 = ssub.s32 16, 16
      %19 = vsyncadd [#allocation6], %s18
      %22 = dma.hbm_to_smem %s0, 16, [#allocation3], [#allocation6]
    $region5: #{tpu_custom_call.1} parent=1 // pred_fallthru
      _
    // Predicated region
    $region6: #{tpu_custom_call.1} parent=1 // pred_check
      _
    $region7: #{tpu_custom_call.1} parent=1 // pred_check_branch
      %24 = sbr.rel (0) target = $region9
    $region8: #{tpu_custom_call.1} parent=1 // pred_region
      %s26 = ssub.s32 16, 16
      %27 = vsyncadd [#allocation8], %s26
      %s29 = sshll.u32 %s1, 4
      %s30 = int_to_ptr.vmem [resolvable:$true] %s29
      %32 = dma.vmem_to_smem %s30, 16, [#allocation9], [#allocation8]
    $region9: #{tpu_custom_call.1} parent=1 // pred_fallthru
      _
    // Predicated region
    $region10: #{tpu_custom_call.1} parent=1 // pred_check
      _
    $region11: #{tpu_custom_call.1} parent=1 // pred_check_branch
      %34 = sbr.rel (0) target = $region13
    $region12: #{tpu_custom_call.1} parent=1 // pred_region
      %s36 = ssub.s32 2048, 2048
      %37 = vsyncadd [#allocation4], %s36
      %s38 = sshll.u32 [#allocation10], 4
      %s39 = int_to_ptr.vmem [resolvable:$true] %s38
      %44 = dma.hbm_to_vmem [thread:$0]  %s2, 2048, %s39, [#allocation4], 128, 128, 8
    $region13: #{tpu_custom_call.1} parent=1 // pred_fallthru
      _
    // Predicated region
    $region14: #{tpu_custom_call.1} parent=1 // pred_check
      _
    $region15: #{tpu_custom_call.1} parent=1 // pred_check_branch
      %46 = sbr.rel (0) target = $region17
    $region16: #{tpu_custom_call.1} parent=1 // pred_region
      %47 = dma.done [#allocation6], 16
    $region17: #{tpu_custom_call.1} parent=1 // pred_fallthru
      _
    // Predicated region
    $region18: #{tpu_custom_call.1} parent=1 // pred_check
      _
    $region19: #{tpu_custom_call.1} parent=1 // pred_check_branch
      %49 = sbr.rel (0) target = $region21
    $region20: #{tpu_custom_call.1} parent=1 // pred_region
      %50 = dma.done [#allocation8], 16
    $region21: #{tpu_custom_call.1} parent=1 // pred_fallthru
      _
    // Predicated region
    $region22: #{tpu_custom_call.1} parent=1 // pred_check
      _
    $region23: #{tpu_custom_call.1} parent=1 // pred_check_branch
      %52 = sbr.rel (0) target = $region25
    $region24: #{tpu_custom_call.1} parent=1 // pred_region
      %53 = dma.done [#allocation4], 2048
    $region25: #{tpu_custom_call.1} parent=1 // pred_fallthru
      _
    %54 = sfence
    %v55 = vlaneseq
    %v56 = vand.u32 %v55, 127
    %s57 = sld [smem:[#allocation3]]
    %s58 = scalar_lea.vmem [#allocation10], %s57
    %v59 = vld [vmem:[%s58] sm:$0x1]
    %60 = vst [vmem:[#allocation11] sm:$0x1] %v59
    %s61 = sld [smem:[#allocation9]]
    %v62 = vstv %s61
    %vm63 = vcmp.eq.s32.totalorder %v56, %v62
    %v64 = vsel %vm63, %v59, 0.0
    %vm65 = vcmask 1040384
    %v66 = vsel %vm65, %v64, 0.0
    %67 = vadd.xlane.f32.xlu0 %v66
    %v68 = vpop.xlane.xlu0 %67
    %vm69 = vcmask 0
    %70 = vst.msk [vmem:[#allocation2] sm:$0x1] %vm69, %v68
    %s71 = sld [smem:[#allocation3 + $0x1]]
    %s72 = scalar_lea.vmem [#allocation10], %s71
    %v73 = vld [vmem:[%s72] sm:$0x1]
    %74 = vst [vmem:[#allocation11 + $0x1] sm:$0x1] %v73
    %s75 = sld [smem:[#allocation9 + $0x1]]
    %v76 = vstv %s75
    %vm77 = vcmp.eq.s32.totalorder %v56, %v76
    %v78 = vsel %vm77, %v73, 0.0
    %v79 = vsel %vm65, %v78, 0.0
    %80 = vadd.xlane.f32.xlu0 %v79
    %v81 = vpop.xlane.xlu0 %80
    %82 = vst.msk [vmem:[#allocation2 + $0x1] sm:$0x1] %vm69, %v81
    %s83 = sld [smem:[#allocation3 + $0x2]]
    %s84 = scalar_lea.vmem [#allocation10], %s83
    %v85 = vld [vmem:[%s84] sm:$0x1]
    %86 = vst [vmem:[#allocation11 + $0x2] sm:$0x1] %v85
    %s87 = sld [smem:[#allocation9 + $0x2]]
    %v88 = vstv %s87
    %vm89 = vcmp.eq.s32.totalorder %v56, %v88
    %v90 = vsel %vm89, %v85, 0.0
    %v91 = vsel %vm65, %v90, 0.0
    %92 = vadd.xlane.f32.xlu0 %v91
    %v93 = vpop.xlane.xlu0 %92
    %94 = vst.msk [vmem:[#allocation2 + $0x2] sm:$0x1] %vm69, %v93
    %s95 = sld [smem:[#allocation3 + $0x3]]
    %s96 = scalar_lea.vmem [#allocation10], %s95
    %v97 = vld [vmem:[%s96] sm:$0x1]
    %98 = vst [vmem:[#allocation11 + $0x3] sm:$0x1] %v97
    %s99 = sld [smem:[#allocation9 + $0x3]]
    %v100 = vstv %s99
    %vm101 = vcmp.eq.s32.totalorder %v56, %v100
    %v102 = vsel %vm101, %v97, 0.0
    %v103 = vsel %vm65, %v102, 0.0
    %104 = vadd.xlane.f32.xlu0 %v103
    %v105 = vpop.xlane.xlu0 %104
    %106 = vst.msk [vmem:[#allocation2 + $0x3] sm:$0x1] %vm69, %v105
    %s107 = sld [smem:[#allocation3 + $0x4]]
    %s108 = scalar_lea.vmem [#allocation10], %s107
    %v109 = vld [vmem:[%s108] sm:$0x1]
    %110 = vst [vmem:[#allocation11 + $0x4] sm:$0x1] %v109
    %s111 = sld [smem:[#allocation9 + $0x4]]
    %v112 = vstv %s111
    %vm113 = vcmp.eq.s32.totalorder %v56, %v112
    %v114 = vsel %vm113, %v109, 0.0
    %v115 = vsel %vm65, %v114, 0.0
    %116 = vadd.xlane.f32.xlu0 %v115
    %v117 = vpop.xlane.xlu0 %116
    %118 = vst.msk [vmem:[#allocation2 + $0x4] sm:$0x1] %vm69, %v117
    %s119 = sld [smem:[#allocation3 + $0x5]]
    %s120 = scalar_lea.vmem [#allocation10], %s119
    %v121 = vld [vmem:[%s120] sm:$0x1]
    %122 = vst [vmem:[#allocation11 + $0x5] sm:$0x1] %v121
    %s123 = sld [smem:[#allocation9 + $0x5]]
    %v124 = vstv %s123
    %vm125 = vcmp.eq.s32.totalorder %v56, %v124
    %v126 = vsel %vm125, %v121, 0.0
    %v127 = vsel %vm65, %v126, 0.0
    %128 = vadd.xlane.f32.xlu0 %v127
    %v129 = vpop.xlane.xlu0 %128
    %130 = vst.msk [vmem:[#allocation2 + $0x5] sm:$0x1] %vm69, %v129
    %s131 = sld [smem:[#allocation3 + $0x6]]
    %s132 = scalar_lea.vmem [#allocation10], %s131
    %v133 = vld [vmem:[%s132] sm:$0x1]
    %134 = vst [vmem:[#allocation11 + $0x6] sm:$0x1] %v133
    %s135 = sld [smem:[#allocation9 + $0x6]]
    %v136 = vstv %s135
    %vm137 = vcmp.eq.s32.totalorder %v56, %v136
    %v138 = vsel %vm137, %v133, 0.0
    %v139 = vsel %vm65, %v138, 0.0
    %140 = vadd.xlane.f32.xlu0 %v139
    %v141 = vpop.xlane.xlu0 %140
    %142 = vst.msk [vmem:[#allocation2 + $0x6] sm:$0x1] %vm69, %v141
    %s143 = sld [smem:[#allocation3 + $0x7]]
    %s144 = scalar_lea.vmem [#allocation10], %s143
    %v145 = vld [vmem:[%s144] sm:$0x1]
    %146 = vst [vmem:[#allocation11 + $0x7] sm:$0x1] %v145
    %s147 = sld [smem:[#allocation9 + $0x7]]
    %v148 = vstv %s147
    %vm149 = vcmp.eq.s32.totalorder %v56, %v148
    %v150 = vsel %vm149, %v145, 0.0
    %v151 = vsel %vm65, %v150, 0.0
    %152 = vadd.xlane.f32.xlu0 %v151
    %v153 = vpop.xlane.xlu0 %152
    %154 = vst.msk [vmem:[#allocation2 + $0x7] sm:$0x1] %vm69, %v153
    %s155 = sld [smem:[#allocation3 + $0x8]]
    %s156 = scalar_lea.vmem [#allocation10], %s155
    %v157 = vld [vmem:[%s156] sm:$0x1]
    %158 = vst [vmem:[#allocation11 + $0x8] sm:$0x1] %v157
    %s159 = sld [smem:[#allocation9 + $0x8]]
    %v160 = vstv %s159
    %vm161 = vcmp.eq.s32.totalorder %v56, %v160
    %v162 = vsel %vm161, %v157, 0.0
    %v163 = vsel %vm65, %v162, 0.0
    %164 = vadd.xlane.f32.xlu0 %v163
    %v165 = vpop.xlane.xlu0 %164
    %166 = vst.msk [vmem:[#allocation2 + $0x8] sm:$0x1] %vm69, %v165
    %s167 = sld [smem:[#allocation3 + $0x9]]
    %s168 = scalar_lea.vmem [#allocation10], %s167
    %v169 = vld [vmem:[%s168] sm:$0x1]
    %170 = vst [vmem:[#allocation11 + $0x9] sm:$0x1] %v169
    %s171 = sld [smem:[#allocation9 + $0x9]]
    %v172 = vstv %s171
    %vm173 = vcmp.eq.s32.totalorder %v56, %v172
    %v174 = vsel %vm173, %v169, 0.0
    %v175 = vsel %vm65, %v174, 0.0
    %176 = vadd.xlane.f32.xlu0 %v175
    %v177 = vpop.xlane.xlu0 %176
    %178 = vst.msk [vmem:[#allocation2 + $0x9] sm:$0x1] %vm69, %v177
    %s179 = sld [smem:[#allocation3 + $0xa]]
    %s180 = scalar_lea.vmem [#allocation10], %s179
    %v181 = vld [vmem:[%s180] sm:$0x1]
    %182 = vst [vmem:[#allocation11 + $0xa] sm:$0x1] %v181
    %s183 = sld [smem:[#allocation9 + $0xa]]
    %v184 = vstv %s183
    %vm185 = vcmp.eq.s32.totalorder %v56, %v184
    %v186 = vsel %vm185, %v181, 0.0
    %v187 = vsel %vm65, %v186, 0.0
    %188 = vadd.xlane.f32.xlu0 %v187
    %v189 = vpop.xlane.xlu0 %188
    %190 = vst.msk [vmem:[#allocation2 + $0xa] sm:$0x1] %vm69, %v189
    %s191 = sld [smem:[#allocation3 + $0xb]]
    %s192 = scalar_lea.vmem [#allocation10], %s191
    %v193 = vld [vmem:[%s192] sm:$0x1]
    %194 = vst [vmem:[#allocation11 + $0xb] sm:$0x1] %v193
    %s195 = sld [smem:[#allocation9 + $0xb]]
    %v196 = vstv %s195
    %vm197 = vcmp.eq.s32.totalorder %v56, %v196
    %v198 = vsel %vm197, %v193, 0.0
    %v199 = vsel %vm65, %v198, 0.0
    %200 = vadd.xlane.f32.xlu0 %v199
    %v201 = vpop.xlane.xlu0 %200
    %202 = vst.msk [vmem:[#allocation2 + $0xb] sm:$0x1] %vm69, %v201
    %s203 = sld [smem:[#allocation3 + $0xc]]
    %s204 = scalar_lea.vmem [#allocation10], %s203
    %v205 = vld [vmem:[%s204] sm:$0x1]
    %206 = vst [vmem:[#allocation11 + $0xc] sm:$0x1] %v205
    %s207 = sld [smem:[#allocation9 + $0xc]]
    %v208 = vstv %s207
    %vm209 = vcmp.eq.s32.totalorder %v56, %v208
    %v210 = vsel %vm209, %v205, 0.0
    %v211 = vsel %vm65, %v210, 0.0
    %212 = vadd.xlane.f32.xlu0 %v211
    %v213 = vpop.xlane.xlu0 %212
    %214 = vst.msk [vmem:[#allocation2 + $0xc] sm:$0x1] %vm69, %v213
    %s215 = sld [smem:[#allocation3 + $0xd]]
    %s216 = scalar_lea.vmem [#allocation10], %s215
    %v217 = vld [vmem:[%s216] sm:$0x1]
    %218 = vst [vmem:[#allocation11 + $0xd] sm:$0x1] %v217
    %s219 = sld [smem:[#allocation9 + $0xd]]
    %v220 = vstv %s219
    %vm221 = vcmp.eq.s32.totalorder %v56, %v220
    %v222 = vsel %vm221, %v217, 0.0
    %v223 = vsel %vm65, %v222, 0.0
    %224 = vadd.xlane.f32.xlu0 %v223
    %v225 = vpop.xlane.xlu0 %224
    %226 = vst.msk [vmem:[#allocation2 + $0xd] sm:$0x1] %vm69, %v225
    %s227 = sld [smem:[#allocation3 + $0xe]]
    %s228 = scalar_lea.vmem [#allocation10], %s227
    %v229 = vld [vmem:[%s228] sm:$0x1]
    %230 = vst [vmem:[#allocation11 + $0xe] sm:$0x1] %v229
    %s231 = sld [smem:[#allocation9 + $0xe]]
    %v232 = vstv %s231
    %vm233 = vcmp.eq.s32.totalorder %v56, %v232
    %v234 = vsel %vm233, %v229, 0.0
    %v235 = vsel %vm65, %v234, 0.0
    %236 = vadd.xlane.f32.xlu0 %v235
    %v237 = vpop.xlane.xlu0 %236
    %238 = vst.msk [vmem:[#allocation2 + $0xe] sm:$0x1] %vm69, %v237
    %s239 = sld [smem:[#allocation3 + $0xf]]
    %s240 = scalar_lea.vmem [#allocation10], %s239
    %v241 = vld [vmem:[%s240] sm:$0x1]
    %242 = vst [vmem:[#allocation11 + $0xf] sm:$0x1] %v241
    %s243 = sld [smem:[#allocation9 + $0xf]]
    %v244 = vstv %s243
    %vm245 = vcmp.eq.s32.totalorder %v56, %v244
    %v246 = vsel %vm245, %v241, 0.0
    %v247 = vsel %vm65, %v246, 0.0
    %248 = vadd.xlane.f32.xlu0 %v247
    %v249 = vpop.xlane.xlu0 %248
    %250 = vst.msk [vmem:[#allocation2 + $0xf] sm:$0x1] %vm69, %v249
    %v251 = vld [vmem:[#allocation11] sm:$0xff]
    %v252 = vld [vmem:[#allocation11 + $0x8] sm:$0xff]
    %253 = vmax.xlane.f32.xlu0 %v251
    %v254 = vpop.xlane.xlu0 %253
    %255 = vmax.xlane.f32.xlu0 %v252
    %v256 = vpop.xlane.xlu0 %255
    %v257 = vsub.f32 %v251, %v254
    %v258 = vsub.f32 %v252, %v256
    %v259 = vmul.f32 %v257, 1.442695
    %v260 = vpow.pop %v259
    %v261 = vmul.f32 %v258, 1.442695
    %v262 = vpow.pop %v261
    %263 = vadd.xlane.f32.xlu0 %v260
    %v264 = vpop.xlane.xlu0 %263
    %265 = vadd.xlane.f32.xlu0 %v262
    %v266 = vpop.xlane.xlu0 %265
    %v267 = vlog2.pop %v264
    %v268 = vmul.f32 %v267, 0.6931472
    %v269 = vlog2.pop %v266
    %v270 = vmul.f32 %v269, 0.6931472
    %v271 = vadd.f32 %v254, %v268
    %v272 = vadd.f32 %v256, %v270
    %v273 = vld [vmem:[#allocation2] sm:$0xff]
    %v274 = vld [vmem:[#allocation2 + $0x8] sm:$0xff]
    %v275 = vsub.f32 %v271, %v273
    %v276 = vsub.f32 %v272, %v274
    %vm277 = vcmask 7168
    %v278 = vsel %vm277, %v275, 0.0
    %v279 = vsel %vm277, %v276, 0.0
    %v280 = vadd.f32 %v278, %v279
    %281 = vadd.xlane.f32.xlu0 %v280
    %v282 = vpop.xlane.xlu0 %281
    %v283 = vrot.slane %v282, 4
    %v284 = vadd.f32 %v282, %v283
    %v285 = vrot.slane %v284, 2
    %v286 = vadd.f32 %v284, %v285
    %v287 = vrot.slane %v286, 1
    %v288 = vadd.f32 %v286, %v287
    %s289 = vtos %v288
    %v290 = vrcp.pop 16.0
    %s291 = vtos %v290
    %s292 = smul.f32 %s289, %s291
    %s293 = scalar_lea.smem [#allocation12], 0
    %294 = sst [smem:[%s293]] %s292
    // Predicated region
    $region26: #{tpu_custom_call.1} parent=1 // pred_check
      _
    $region27: #{tpu_custom_call.1} parent=1 // pred_check_branch
      %296 = sbr.rel (0) target = $region29
    $region28: #{tpu_custom_call.1} parent=1 // pred_region
      %s298 = ssub.s32 256, 256
      %299 = vsyncadd [#allocation5], %s298
      %s300 = sshll.u32 [#allocation11], 4
      %s301 = int_to_ptr.vmem [resolvable:$true] %s300
      %306 = dma.vmem_to_hbm [thread:$0]  %s301, 256, %s3, [#allocation5], 128, 128, 8
    $region29: #{tpu_custom_call.1} parent=1 // pred_fallthru
      _
    // Predicated region
    $region30: #{tpu_custom_call.1} parent=1 // pred_check
      _
    $region31: #{tpu_custom_call.1} parent=1 // pred_check_branch
      %308 = sbr.rel (0) target = $region33
    $region32: #{tpu_custom_call.1} parent=1 // pred_region
      %s310 = ssub.s32 16, 16
      %311 = vsyncadd [#allocation7], %s310
      %314 = dma.smem_to_hbm [#allocation12], 16, %s4, [#allocation7]
    $region33: #{tpu_custom_call.1} parent=1 // pred_fallthru
      _
    // Predicated region
    $region34: #{tpu_custom_call.1} parent=1 // pred_check
      _
    $region35: #{tpu_custom_call.1} parent=1 // pred_check_branch
      %316 = sbr.rel (0) target = $region37
    $region36: #{tpu_custom_call.1} parent=1 // pred_region
      %317 = dma.done [#allocation5], 256
    $region37: #{tpu_custom_call.1} parent=1 // pred_fallthru
      _
    // Predicated region
    $region38: #{tpu_custom_call.1} parent=1 // pred_check
      _
    $region39: #{tpu_custom_call.1} parent=1 // pred_check_branch
      %319 = sbr.rel (0) target = $region41
    $region40: #{tpu_custom_call.1} parent=1 // pred_region
      %320 = dma.done [#allocation7], 16
    $region41: #{tpu_custom_call.1} parent=1 // pred_fallthru
      _
    %321 = sfence
    %322 = vsyncpa [#allocation4], 1
    %323 = vsyncpa [#allocation5], 1
    %324 = vsyncpa [#allocation6], 1
    %325 = vsyncpa [#allocation7], 1
    %326 = vsyncpa [#allocation8], 1

</llo_original>
